<compile_context>
chip_gen: v7x
topology: tpu7x:2x2x1
jax: 0.10.0
libtpu: 0.0.40
codegen_flags: <defaults>
</compile_context>

<pallas_src>
import jax
import jax.numpy as jnp
from jax import lax
from jax.experimental import pallas as pl
from jax.experimental.pallas import tpu as pltpu


_TARGET_BLOCK_BYTES = 6 * 1024 * 1024   # ~6 MiB of logits per grid step
_SUB_CHUNK_ROWS = 8                      # register-blocking chunk height (sublanes)


def _round_up(x, m):
    return ((x + m - 1) // m) * m


def _spatial_layout(h, w):
    """Pick a (rows, cols) view of the H*W pixels.

    Keeps (H, W) when W is already lane-dense; otherwise, if H*W has a
    lane-friendly factorization, use the free contiguous reshape
    (N, C, H, W) -> (N, C, rows, cols) with cols a multiple of 128.
    """
    if w >= 128:
        return h, w, False
    hw = h * w
    for lane in (1024, 512, 256, 128):
        if hw % lane == 0:
            return hw // lane, lane, True
    return h, w, False


def _make_kernel(c, th, tw, ch, rows, cols, weighted, unroll):
    mask_rows = (rows % th) != 0
    mask_cols = (cols % tw) != 0
    n_chunks = th // ch
    unroll1 = max(1, min(unroll, c - 1))
    unroll2 = max(1, min(unroll, c))

    def kernel(w_sref, x_ref, t_ref, out_ref):
        # w_sref : (C,)        f32 class weights in SMEM (scalar prefetch)
        # x_ref  : (C, TH, TW) logits block (native dtype)
        # t_ref  : (TH, TW)    int32 targets block
        # out_ref: (2, TH, TW) f32 per-(batch, row-tile) partial sums,
        #          resident across the lane-tile (reduction) axis.
        i = pl.program_id(1)
        j = pl.program_id(2)

        @pl.when(j == 0)
        def _():
            out_ref[...] = jnp.zeros_like(out_ref)

        @pl.loop(0, n_chunks)
        def _chunk(ci):
            h0 = pl.multiple_of(ci * ch, ch)
            sl = pl.ds(h0, ch)
            tch = t_ref[sl, :]                                # (ch, tw) int32

            # ---- Pass 1: max over classes (native dtype; max is exact). ----
            def max_body(cc, m):
                return jnp.maximum(m, x_ref[cc, sl, :])

            m = lax.fori_loop(1, c, max_body, x_ref[0, sl, :], unroll=unroll1)
            m32 = m.astype(jnp.float32)

            # ---- Pass 2: sum(exp(x - m)) + gather x[t] (and weight[t]). ----
            zeros = jnp.zeros((ch, tw), jnp.float32)
            if weighted:
                def p2_body(cc, carry):
                    s, x_t, w_t = carry
                    xc = x_ref[cc, sl, :].astype(jnp.float32)
                    s = s + jnp.exp(xc - m32)
                    sel = tch == cc
                    x_t = jnp.where(sel, xc, x_t)
                    w_t = jnp.where(sel, w_sref[cc], w_t)     # scalar splat
                    return s, x_t, w_t

                s, x_t, w_t = lax.fori_loop(
                    0, c, p2_body, (zeros, zeros, zeros), unroll=unroll2)
            else:
                def p2_body(cc, carry):
                    s, x_t = carry
                    xc = x_ref[cc, sl, :].astype(jnp.float32)
                    s = s + jnp.exp(xc - m32)
                    x_t = jnp.where(tch == cc, xc, x_t)
                    return s, x_t

                s, x_t = lax.fori_loop(
                    0, c, p2_body, (zeros, zeros), unroll=unroll2)
                # weight=None: valid-target indicator replaces the per-class
                # weight select (one fewer accumulator + VALU op per class).
                w_t = jnp.logical_and(tch >= 0, tch < c).astype(jnp.float32)

            lse = jnp.log(s) + m32
            contrib = w_t * (lse - x_t)                       # -w[t] * logp[t]

            if mask_rows or mask_cols:
                # Ragged edge tiles: out-of-range pixels read unspecified
                # data, so force their contributions to exactly 0.
                valid = None
                if mask_rows:
                    r = lax.broadcasted_iota(jnp.int32, (ch, tw), 0)
                    valid = (r + (i * th + h0)) < rows
                if mask_cols:
                    col = lax.broadcasted_iota(jnp.int32, (ch, tw), 1) + j * tw
                    in_cols = col < cols
                    valid = in_cols if valid is None else jnp.logical_and(valid, in_cols)
                contrib = jnp.where(valid, contrib, 0.0)
                w_t = jnp.where(valid, w_t, 0.0)

            out_ref[0, sl, :] = out_ref[0, sl, :] + contrib
            out_ref[1, sl, :] = out_ref[1, sl, :] + w_t

    return kernel


def cross_entropy_loss_2d(outputs, targets, weight=None):
    """log_softmax(outputs, dim=1) + NLLLoss2d(weight), 'mean' reduction.

    outputs: (N, C, H, W) float logits;  targets: (N, H, W) integer class ids.
    Targets outside [0, C) (e.g. ignore_index=-100) are ignored, as in torch.
    """
    n, c, h, w = outputs.shape
    itemsize = jnp.dtype(outputs.dtype).itemsize

    weighted = weight is not None
    if weighted:
        weight_arr = jnp.asarray(weight, dtype=jnp.float32).reshape(c)
    else:
        weight_arr = jnp.ones((c,), dtype=jnp.float32)       # unused by the kernel

    rows, cols, reshaped = _spatial_layout(h, w)
    if reshaped:
        x = outputs.reshape(n, c, rows, cols)                 # free (contiguous)
        t = targets.reshape(n, rows, cols)
    else:
        x = outputs
        t = targets
    t = t.astype(jnp.int32)

    # ---- Tile selection --------------------------------------------------
    if cols >= 128:
        tw = min(512, (cols // 128) * 128)
        # Keep even the minimum (8-row) logits block inside the VMEM budget
        # when the class count is very large.
        while tw > 128 and c * _SUB_CHUNK_ROWS * tw * itemsize > _TARGET_BLOCK_BYTES:
            tw -= 128
    else:
        tw = cols                                             # full extent (<128 lanes)

    if rows < _SUB_CHUNK_ROWS:
        th = rows                                             # full extent, one chunk
        ch = rows
    else:
        th_cap = _TARGET_BLOCK_BYTES // max(1, c * tw * itemsize)
        th_cap = max(_SUB_CHUNK_ROWS, min(512, th_cap))
        th_cap = (th_cap // _SUB_CHUNK_ROWS) * _SUB_CHUNK_ROWS
        th = min(th_cap, _round_up(rows, _SUB_CHUNK_ROWS))
        ch = _SUB_CHUNK_ROWS

    n_i = pl.cdiv(rows, th)
    n_j = pl.cdiv(cols, tw)
    grid = (n, n_i, n_j)

    kernel = _make_kernel(c, th, tw, ch, rows, cols, weighted, unroll=8)

    blk_x = c * th * tw * itemsize
    blk_t = th * tw * 4
    blk_o = 2 * th * tw * 4
    vmem_limit = min(max(2 * (blk_x + blk_t + blk_o) + (2 << 20),
                         32 * 1024 * 1024),
                     48 * 1024 * 1024)

    parts = pl.pallas_call(
        kernel,
        out_shape=jax.ShapeDtypeStruct((n, n_i, 2, th, tw), jnp.float32),
        grid_spec=pltpu.PrefetchScalarGridSpec(
            num_scalar_prefetch=1,                            # class weights -> SMEM
            grid=grid,
            in_specs=[
                pl.BlockSpec((None, c, th, tw), lambda b, i, j, wref: (b, 0, i, j)),
                pl.BlockSpec((None, th, tw), lambda b, i, j, wref: (b, i, j)),
            ],
            out_specs=pl.BlockSpec((None, None, 2, th, tw),
                                   lambda b, i, j, wref: (b, i, 0, 0, 0)),
        ),
        compiler_params=pltpu.CompilerParams(
            dimension_semantics=("parallel", "parallel", "arbitrary"),
            vmem_limit_bytes=vmem_limit),
    )(weight_arr, x, t)

    # NLLLoss 'mean' reduction: sum(-w[t_i] * logp_i) / sum(w[t_i]).
    loss_sum = jnp.sum(parts[:, :, 0], dtype=jnp.float32)
    w_sum = jnp.sum(parts[:, :, 1], dtype=jnp.float32)
    return loss_sum / w_sum     # NaN if every pixel is ignored (as in PyTorch)


class CrossEntropyLoss2d:
    """Drop-in for the PyTorch module: NLLLoss2d(weight)(log_softmax(x, dim=1), t)."""

    def __init__(self, weight=None):
        self.weight = weight

    def __call__(self, outputs, targets):
        return cross_entropy_loss_2d(outputs, targets, self.weight)


def _reference(outputs, targets, weight=None):
    """Pure-JAX reference (log_softmax over channels + weighted mean NLL)."""
    n, c, h, w = outputs.shape
    logp = jax.nn.log_softmax(outputs.astype(jnp.float32), axis=1)
    t = targets
    valid = jnp.logical_and(t >= 0, t < c)
    tc = jnp.clip(t, 0, c - 1)
    logp_t = jnp.take_along_axis(logp, tc[:, None], axis=1)[:, 0]
    if weight is None:
        w_t = valid.astype(jnp.float32)
    else:
        w_arr = jnp.asarray(weight, jnp.float32)
        w_t = jnp.where(valid, w_arr[tc], 0.0)
    return -(w_t * logp_t).sum() / w_t.sum()


if __name__ == "__main__":
    key = jax.random.PRNGKey(0)
    k1, k2, k3, k4, k5 = jax.random.split(key, 5)

    # 1) Module default (weight=None), NCHW logits.
    N, C, H, W = 2, 4, 16, 16
    x1 = jax.random.normal(k1, (N, C, H, W), dtype=jnp.float32)
    t1 = jax.random.randint(k2, (N, H, W), 0, C, dtype=jnp.int32)
    loss1 = CrossEntropyLoss2d()(x1, t1)
    ref1 = _reference(x1, t1)

    # 2) Class-weighted path.
    wgt = jnp.array([0.5, 2.0, 1.0, 0.25], dtype=jnp.float32)
    loss2 = CrossEntropyLoss2d(weight=wgt)(x1, t1)
    ref2 = _reference(x1, t1, weight=wgt)

    # 3) Ragged spatial dims (exercises in-kernel edge masking, no pad) plus
    #    PyTorch's default ignore_index=-100 on ~10% of pixels.
    N3, C3, H3, W3 = 2, 5, 15, 20
    x3 = jax.random.normal(k3, (N3, C3, H3, W3), dtype=jnp.float32)
    t3 = jax.random.randint(k4, (N3, H3, W3), 0, C3, dtype=jnp.int32)
    ign = jax.random.bernoulli(k5, 0.1, (N3, H3, W3))
    t3 = jnp.where(ign, -100, t3)
    loss3 = CrossEntropyLoss2d()(x3, t3)
    ref3 = _reference(x3, t3)

    for got, ref in ((loss1, ref1), (loss2, ref2), (loss3, ref3)):
        got = jax.block_until_ready(got)
        assert jnp.allclose(got, ref, rtol=1e-4, atol=1e-5), (got, ref)

    print("KERNEL_OK")
</pallas_src>

<mosaic_0001>
module attributes {stable_mosaic.version = 11 : i64} {
  func.func @kernel(%arg0: i32, %arg1: i32, %arg2: i32, %arg3: memref<4xf32, #tpu.memory_space<smem>>, %arg4: memref<1x4x1x256xf32, #tpu.memory_space<vmem>>, %arg5: memref<1x1x256xi32, #tpu.memory_space<vmem>>, %arg6: memref<1x1x2x1x256xf32, #tpu.memory_space<vmem>>) attributes {dimension_semantics = [#tpu.dimension_semantics<parallel>, #tpu.dimension_semantics<parallel>, #tpu.dimension_semantics<arbitrary>], iteration_bounds = array<i64: 2, 1, 1>, scalar_prefetch = 1 : i64, scratch_operands = 0 : i64, tpu.core_type = #tpu.core_type<tc>, window_params = [{transform_indices = @transform_0, window_bounds = array<i64: 1, 4, 1, 256>}, {transform_indices = @transform_1, window_bounds = array<i64: 1, 1, 256>}, {transform_indices = @transform_2, window_bounds = array<i64: 1, 1, 2, 1, 256>}]} {
    %c0_i32 = arith.constant 0 : i32
    %0 = arith.cmpi eq, %arg2, %c0_i32 : i32
    %1 = arith.extui %0 : i1 to i32
    %c0_i32_0 = arith.constant 0 : i32
    %2 = arith.cmpi ne, %1, %c0_i32_0 : i32
    scf.if %2 {
      %cst_46 = arith.constant 0.000000e+00 : f32
      %96 = vector.broadcast %cst_46 : f32 to vector<2x1x256xf32>
      %c0_47 = arith.constant 0 : index
      %c0_48 = arith.constant 0 : index
      %c0_49 = arith.constant 0 : index
      %c0_50 = arith.constant 0 : index
      %c0_51 = arith.constant 0 : index
      %97 = vector.load %arg6[%c0_47, %c0_48, %c0_49, %c0_50, %c0_51] : memref<1x1x2x1x256xf32, #tpu.memory_space<vmem>>, vector<1x1x2x1x256xf32>
      %98 = vector.shape_cast %97 : vector<1x1x2x1x256xf32> to vector<2x1x256xf32>
      %99 = vector.shape_cast %96 : vector<2x1x256xf32> to vector<1x1x2x1x256xf32>
      tpu.vector_store %arg6[%c0_47, %c0_48, %c0_49, %c0_50, %c0_51], %99 {strides = array<i32>} : memref<1x1x2x1x256xf32, #tpu.memory_space<vmem>>, vector<1x1x2x1x256xf32>,
    } else {
    }
    %c0_i32_1 = arith.constant 0 : i32
    %c1_i32 = arith.constant 1 : i32
    %3 = arith.muli %c0_i32_1, %c1_i32 : i32
    %c0_i32_2 = arith.constant 0 : i32
    %4 = arith.addi %c0_i32_2, %3 : i32
    %c1_i32_3 = arith.constant 1 : i32
    %5 = arith.muli %4, %c1_i32_3 : i32
    %6 = tpu.assume_multiple %5, 1 : i32
    %c0 = arith.constant 0 : index
    %7 = arith.index_cast %6 : i32 to index
    %c0_4 = arith.constant 0 : index
    %8 = vector.load %arg5[%c0, %7, %c0_4] : memref<1x1x256xi32, #tpu.memory_space<vmem>>, vector<1x1x256xi32>
    %9 = vector.shape_cast %8 : vector<1x1x256xi32> to vector<1x256xi32>
    %c0_5 = arith.constant 0 : index
    %c0_6 = arith.constant 0 : index
    %10 = arith.index_cast %6 : i32 to index
    %c0_7 = arith.constant 0 : index
    %11 = vector.load %arg4[%c0_5, %c0_6, %10, %c0_7] : memref<1x4x1x256xf32, #tpu.memory_space<vmem>>, vector<1x1x1x256xf32>
    %12 = vector.shape_cast %11 : vector<1x1x1x256xf32> to vector<1x256xf32>
    %c1_i32_8 = arith.constant 1 : i32
    %c0_9 = arith.constant 0 : index
    %13 = arith.index_cast %c1_i32_8 : i32 to index
    %14 = arith.index_cast %6 : i32 to index
    %c0_10 = arith.constant 0 : index
    %15 = vector.load %arg4[%c0_9, %13, %14, %c0_10] : memref<1x4x1x256xf32, #tpu.memory_space<vmem>>, vector<1x1x1x256xf32>
    %16 = vector.shape_cast %15 : vector<1x1x1x256xf32> to vector<1x256xf32>
    %17 = arith.maximumf %12, %16 : vector<1x256xf32>
    %c2_i32 = arith.constant 2 : i32
    %c0_11 = arith.constant 0 : index
    %18 = arith.index_cast %c2_i32 : i32 to index
    %19 = arith.index_cast %6 : i32 to index
    %c0_12 = arith.constant 0 : index
    %20 = vector.load %arg4[%c0_11, %18, %19, %c0_12] : memref<1x4x1x256xf32, #tpu.memory_space<vmem>>, vector<1x1x1x256xf32>
    %21 = vector.shape_cast %20 : vector<1x1x1x256xf32> to vector<1x256xf32>
    %22 = arith.maximumf %17, %21 : vector<1x256xf32>
    %c3_i32 = arith.constant 3 : i32
    %c0_13 = arith.constant 0 : index
    %23 = arith.index_cast %c3_i32 : i32 to index
    %24 = arith.index_cast %6 : i32 to index
    %c0_14 = arith.constant 0 : index
    %25 = vector.load %arg4[%c0_13, %23, %24, %c0_14] : memref<1x4x1x256xf32, #tpu.memory_space<vmem>>, vector<1x1x1x256xf32>
    %26 = vector.shape_cast %25 : vector<1x1x1x256xf32> to vector<1x256xf32>
    %27 = arith.maximumf %22, %26 : vector<1x256xf32>
    %c3_i32_15 = arith.constant 3 : i32
    %cst = arith.constant 0.000000e+00 : f32
    %28 = vector.broadcast %cst : f32 to vector<1x256xf32>
    %c0_i32_16 = arith.constant 0 : i32
    %c0_17 = arith.constant 0 : index
    %29 = arith.index_cast %c0_i32_16 : i32 to index
    %30 = arith.index_cast %6 : i32 to index
    %c0_18 = arith.constant 0 : index
    %31 = vector.load %arg4[%c0_17, %29, %30, %c0_18] : memref<1x4x1x256xf32, #tpu.memory_space<vmem>>, vector<1x1x1x256xf32>
    %32 = vector.shape_cast %31 : vector<1x1x1x256xf32> to vector<1x256xf32>
    %33 = arith.subf %32, %27 : vector<1x256xf32>
    %34 = math.exp %33 : vector<1x256xf32>
    %35 = arith.addf %28, %34 : vector<1x256xf32>
    %36 = vector.broadcast %c0_i32_16 : i32 to vector<1x256xi32>
    %37 = arith.cmpi eq, %9, %36 : vector<1x256xi32>
    %38 = arith.select %37, %32, %28 : vector<1x256xi1>, vector<1x256xf32>
    %c1_i32_19 = arith.constant 1 : i32
    %c0_20 = arith.constant 0 : index
    %39 = arith.index_cast %c1_i32_19 : i32 to index
    %40 = arith.index_cast %6 : i32 to index
    %c0_21 = arith.constant 0 : index
    %41 = vector.load %arg4[%c0_20, %39, %40, %c0_21] : memref<1x4x1x256xf32, #tpu.memory_space<vmem>>, vector<1x1x1x256xf32>
    %42 = vector.shape_cast %41 : vector<1x1x1x256xf32> to vector<1x256xf32>
    %43 = arith.subf %42, %27 : vector<1x256xf32>
    %44 = math.exp %43 : vector<1x256xf32>
    %45 = arith.addf %35, %44 : vector<1x256xf32>
    %46 = vector.broadcast %c1_i32_19 : i32 to vector<1x256xi32>
    %47 = arith.cmpi eq, %9, %46 : vector<1x256xi32>
    %48 = arith.select %47, %42, %38 : vector<1x256xi1>, vector<1x256xf32>
    %c2_i32_22 = arith.constant 2 : i32
    %c0_23 = arith.constant 0 : index
    %49 = arith.index_cast %c2_i32_22 : i32 to index
    %50 = arith.index_cast %6 : i32 to index
    %c0_24 = arith.constant 0 : index
    %51 = vector.load %arg4[%c0_23, %49, %50, %c0_24] : memref<1x4x1x256xf32, #tpu.memory_space<vmem>>, vector<1x1x1x256xf32>
    %52 = vector.shape_cast %51 : vector<1x1x1x256xf32> to vector<1x256xf32>
    %53 = arith.subf %52, %27 : vector<1x256xf32>
    %54 = math.exp %53 : vector<1x256xf32>
    %55 = arith.addf %45, %54 : vector<1x256xf32>
    %56 = vector.broadcast %c2_i32_22 : i32 to vector<1x256xi32>
    %57 = arith.cmpi eq, %9, %56 : vector<1x256xi32>
    %58 = arith.select %57, %52, %48 : vector<1x256xi1>, vector<1x256xf32>
    %c3_i32_25 = arith.constant 3 : i32
    %c0_26 = arith.constant 0 : index
    %59 = arith.index_cast %c3_i32_25 : i32 to index
    %60 = arith.index_cast %6 : i32 to index
    %c0_27 = arith.constant 0 : index
    %61 = vector.load %arg4[%c0_26, %59, %60, %c0_27] : memref<1x4x1x256xf32, #tpu.memory_space<vmem>>, vector<1x1x1x256xf32>
    %62 = vector.shape_cast %61 : vector<1x1x1x256xf32> to vector<1x256xf32>
    %63 = arith.subf %62, %27 : vector<1x256xf32>
    %64 = math.exp %63 : vector<1x256xf32>
    %65 = arith.addf %55, %64 : vector<1x256xf32>
    %66 = vector.broadcast %c3_i32_25 : i32 to vector<1x256xi32>
    %67 = arith.cmpi eq, %9, %66 : vector<1x256xi32>
    %68 = arith.select %67, %62, %58 : vector<1x256xi1>, vector<1x256xf32>
    %c4_i32 = arith.constant 4 : i32
    %c0_i32_28 = arith.constant 0 : i32
    %69 = vector.broadcast %c0_i32_28 : i32 to vector<1x256xi32>
    %70 = arith.cmpi sge, %9, %69 : vector<1x256xi32>
    %c4_i32_29 = arith.constant 4 : i32
    %71 = vector.broadcast %c4_i32_29 : i32 to vector<1x256xi32>
    %72 = arith.cmpi slt, %9, %71 : vector<1x256xi32>
    %73 = arith.andi %70, %72 : vector<1x256xi1>
    %74 = arith.extui %73 : vector<1x256xi1> to vector<1x256xi32>
    %75 = arith.sitofp %74 : vector<1x256xi32> to vector<1x256xf32>
    %76 = math.log %65 : vector<1x256xf32>
    %77 = arith.addf %76, %27 : vector<1x256xf32>
    %78 = arith.subf %77, %68 : vector<1x256xf32>
    %79 = arith.mulf %75, %78 : vector<1x256xf32>
    %c0_30 = arith.constant 0 : index
    %c0_31 = arith.constant 0 : index
    %c0_32 = arith.constant 0 : index
    %80 = arith.index_cast %6 : i32 to index
    %c0_33 = arith.constant 0 : index
    %81 = vector.load %arg6[%c0_30, %c0_31, %c0_32, %80, %c0_33] : memref<1x1x2x1x256xf32, #tpu.memory_space<vmem>>, vector<1x1x1x1x256xf32>
    %82 = vector.shape_cast %81 : vector<1x1x1x1x256xf32> to vector<1x256xf32>
    %83 = arith.addf %82, %79 : vector<1x256xf32>
    %c0_34 = arith.constant 0 : index
    %c0_35 = arith.constant 0 : index
    %c0_36 = arith.constant 0 : index
    %84 = arith.index_cast %6 : i32 to index
    %c0_37 = arith.constant 0 : index
    %85 = vector.load %arg6[%c0_34, %c0_35, %c0_36, %84, %c0_37] : memref<1x1x2x1x256xf32, #tpu.memory_space<vmem>>, vector<1x1x1x1x256xf32>
    %86 = vector.shape_cast %85 : vector<1x1x1x1x256xf32> to vector<1x256xf32>
    %87 = vector.shape_cast %83 : vector<1x256xf32> to vector<1x1x1x1x256xf32>
    tpu.vector_store %arg6[%c0_34, %c0_35, %c0_36, %84, %c0_37], %87 {strides = array<i32>} : memref<1x1x2x1x256xf32, #tpu.memory_space<vmem>>, vector<1x1x1x1x256xf32>,
    %c0_38 = arith.constant 0 : index
    %c0_39 = arith.constant 0 : index
    %c1 = arith.constant 1 : index
    %88 = arith.index_cast %6 : i32 to index
    %c0_40 = arith.constant 0 : index
    %89 = vector.load %arg6[%c0_38, %c0_39, %c1, %88, %c0_40] : memref<1x1x2x1x256xf32, #tpu.memory_space<vmem>>, vector<1x1x1x1x256xf32>
    %90 = vector.shape_cast %89 : vector<1x1x1x1x256xf32> to vector<1x256xf32>
    %91 = arith.addf %90, %75 : vector<1x256xf32>
    %c0_41 = arith.constant 0 : index
    %c0_42 = arith.constant 0 : index
    %c1_43 = arith.constant 1 : index
    %92 = arith.index_cast %6 : i32 to index
    %c0_44 = arith.constant 0 : index
    %93 = vector.load %arg6[%c0_41, %c0_42, %c1_43, %92, %c0_44] : memref<1x1x2x1x256xf32, #tpu.memory_space<vmem>>, vector<1x1x1x1x256xf32>
    %94 = vector.shape_cast %93 : vector<1x1x1x1x256xf32> to vector<1x256xf32>
    %95 = vector.shape_cast %91 : vector<1x256xf32> to vector<1x1x1x1x256xf32>
    tpu.vector_store %arg6[%c0_41, %c0_42, %c1_43, %92, %c0_44], %95 {strides = array<i32>} : memref<1x1x2x1x256xf32, #tpu.memory_space<vmem>>, vector<1x1x1x1x256xf32>,
    %c1_i32_45 = arith.constant 1 : i32
    return
  }
  func.func @transform_0(%arg0: i32, %arg1: i32, %arg2: i32, %arg3: memref<4xf32, #tpu.memory_space<smem>>) -> (i32, i32, i32, i32) {
    %c0_i32 = arith.constant 0 : i32
    %c0_i32_0 = arith.constant 0 : i32
    return %arg0, %c0_i32, %arg1, %arg2 : i32, i32, i32, i32
  }
  func.func @transform_1(%arg0: i32, %arg1: i32, %arg2: i32, %arg3: memref<4xf32, #tpu.memory_space<smem>>) -> (i32, i32, i32) {
    %c0_i32 = arith.constant 0 : i32
    return %arg0, %arg1, %arg2 : i32, i32, i32
  }
  func.func @transform_2(%arg0: i32, %arg1: i32, %arg2: i32, %arg3: memref<4xf32, #tpu.memory_space<smem>>) -> (i32, i32, i32, i32, i32) {
    %c0_i32 = arith.constant 0 : i32
    %c0_i32_0 = arith.constant 0 : i32
    %c0_i32_1 = arith.constant 0 : i32
    %c0_i32_2 = arith.constant 0 : i32
    return %arg0, %arg1, %c0_i32, %c0_i32_0, %c0_i32_1 : i32, i32, i32, i32, i32
  }
}

</mosaic_0001>

<llo_original>
// kernel: tpu_custom_call.1
$region0: #{tpu_custom_call.1}
  #allocation0 [shape = 'u32[]', space=smem, size = 0x4, offset = 0x4, fixed_abs, tag = 'smem constant byte address 0x4 - core index']
  #allocation1 [shape = 'u32[144,128]{1,0:T(1,128)}', space=vmem, size = 0x12000, scoped, tag = 'internal scratch']
  #allocation2 [shape = 's32[1]{0}', space=sflag, size = 0x4, scoped, tag = 'scoped memory for tpu_custom_call.1']
  #allocation3 [shape = 'u8[512]{0}', space=smem, size = 0x200, scoped, tag = 'prefetched SMEM operand 0']
  %s0 = inlined_call_operand.hbm [shape: f32[4], index: 0, kind: input, shape index: {}]
  %s1 = inlined_call_operand.hbm [shape: f32[2,4,1,256], index: 1, kind: input, shape index: {}]
  %s2 = inlined_call_operand.vmem [shape: s32[2,1,256], index: 2, kind: input, shape index: {}]
  %s3 = inlined_call_operand.hbm [shape: f32[2,1,2,1,256], index: 3, kind: output, shape index: {}]
  %s4 = sld [smem:[#allocation0]]
  $region49: #{tpu_custom_call.1} parent=0
    _
  %s6 = ssub.s32 1, %s4
  %s7 = scalar_select 0, %s6, %s4
  %9 = dma.hbm_to_smem %s0, 16, [#allocation3], [#allocation2]
  %10 = dma.done [#allocation2], 16
  %11 = sfence
  $region1: #{tpu_custom_call.1} parent=0
    #allocation4 [shape = 'u8[8192]{0}', space=vmem, size = 0x2000, scoped, tag = 'input window, operand 1']
    #allocation5 [shape = 's32[2]{0}', space=sflag, size = 0x8, scoped, tag = 'scoped memory for tpu_custom_call.1']
    #allocation6 [shape = 's32[2]{0}', space=sflag, size = 0x8, scoped, tag = 'scoped memory for tpu_custom_call.1']
    #allocation7 [shape = 'u8[4096]{0}', space=vmem, size = 0x1000, scoped, tag = 'output window, operand 0']
    %12 = vsyncpa [#allocation5], 0
    %s13 = scalar_lea.sflag [#allocation5], 1
    %14 = vsyncpa %s13, 0
    %15 = vsyncpa [#allocation6], 0
    %s16 = scalar_lea.sflag [#allocation6], 1
    %17 = vsyncpa %s16, 0
    loop: start=0, step=1, limit=4
    $region2: #{tpu_custom_call.1} parent=1 // loop_pre_header
      _
    $region3: #{tpu_custom_call.1} parent=1 // loop_header
      %s19 = sphi 0, %s23
      %p20 = scmp.ge.s32.totalorder %s19, 4
      %s26 = sphi 0, %s45
      %s27 = sphi 0, %s41
      %s28 = sphi 0, %s37
      %s29 = sphi 0, %s26
      %s30 = sphi 0, %s27
      %s31 = sphi 0, %s28
      %s32 = sphi 0, %s29
      %s33 = sphi 0, %s30
      %s34 = sphi 0, %s31
      %s52 = sphi 0, %s54
      %s55 = sphi 0, %s52
      %s56 = sphi 0, %s55
      %s72 = sphi 0, %s56
      %s82 = sphi 0, %s84
      %s85 = sphi 0, %s82
      %s86 = sphi 0, %s85
      %s102 = sphi 0, %s86
      %s110 = sphi 0, %s112
      %s113 = sphi 0, %s110
      %s114 = sphi 0, %s113
      %s130 = sphi 0, %s114
    $region4: #{tpu_custom_call.1} parent=1 // loop_header_branch
      %22 = sbr.rel (%p20) target = $region8
    $region5: #{tpu_custom_call.1} parent=1 // loop_body
      %s24 = ssub.s32 %s19, 1
      %s25 = ssub.s32 %s19, 2
      %s35 = sadd.s32 1, %s28
      %p36 = scmp.ge.s32.totalorder %s35, 1
      %s37 = scalar_select %p36, 0, %s35
      %s38 = sadd.s32 1, %s27
      %s39 = scalar_select %p36, %s38, %s27
      %p40 = scmp.ge.s32.totalorder %s39, 1
      %s41 = scalar_select %p40, 0, %s39
      %s42 = sadd.s32 1, %s26
      %s43 = scalar_select %p40, %s42, %s26
      %p44 = scmp.ge.s32.totalorder %s43, 2
      %s45 = scalar_select %p44, 0, %s43
      %s46 = ssub.s32 %s26, %s45
      %s47 = ssub.s32 %s27, %s41
      %s48 = sor.u32 %s46, %s47
      %s49 = ssub.s32 %s28, %s37
      %s50 = sor.u32 %s48, %s49
      %p51 = scmp.eq.s32.totalorder %s50, 0
      %s53 = sadd.s32 %s52, 1
      %s54 = scalar_select %p51, %s52, %s53
      %p57 = pneg %p51
      %p58 = scmp.eq.s32.totalorder %s19, 1
      %p59 = por %p57, %p58
      %p60 = scmp.ne.s32.totalorder %s52, %s55
      %p61 = scmp.eq.s32.totalorder %s19, 0
      %p62 = por %p60, %p61
      %p63 = scmp.ne.s32.totalorder %s52, %s55
      %p64 = scmp.eq.s32.totalorder %s24, 1
      %p65 = por %p63, %p64
      %p66 = scmp.ne.s32.totalorder %s55, %s56
      %p67 = scmp.eq.s32.totalorder %s24, 0
      %p68 = por %p66, %p67
      %p69 = scmp.ne.s32.totalorder %s55, %s56
      %p70 = scmp.eq.s32.totalorder %s25, 1
      %p71 = por %p69, %p70
      %p73 = scmp.ne.s32.totalorder %s56, %s72
      %p74 = scmp.eq.s32.totalorder %s25, 0
      %p75 = por %p73, %p74
      %s76 = ssub.s32 %s26, %s45
      %s77 = ssub.s32 %s27, %s41
      %s78 = sor.u32 %s76, %s77
      %s79 = ssub.s32 %s28, %s37
      %s80 = sor.u32 %s78, %s79
      %p81 = scmp.eq.s32.totalorder %s80, 0
      %s83 = sadd.s32 %s82, 1
      %s84 = scalar_select %p81, %s82, %s83
      %p87 = pneg %p81
      %p88 = scmp.eq.s32.totalorder %s19, 1
      %p89 = por %p87, %p88
      %p90 = scmp.ne.s32.totalorder %s82, %s85
      %p91 = scmp.eq.s32.totalorder %s19, 0
      %p92 = por %p90, %p91
      %p93 = scmp.ne.s32.totalorder %s82, %s85
      %p94 = scmp.eq.s32.totalorder %s24, 1
      %p95 = por %p93, %p94
      %p96 = scmp.ne.s32.totalorder %s85, %s86
      %p97 = scmp.eq.s32.totalorder %s24, 0
      %p98 = por %p96, %p97
      %p99 = scmp.ne.s32.totalorder %s85, %s86
      %p100 = scmp.eq.s32.totalorder %s25, 1
      %p101 = por %p99, %p100
      %p103 = scmp.ne.s32.totalorder %s86, %s102
      %p104 = scmp.eq.s32.totalorder %s25, 0
      %p105 = por %p103, %p104
      %s106 = ssub.s32 %s26, %s45
      %s107 = ssub.s32 %s27, %s41
      %s108 = sor.u32 %s106, %s107
      %p109 = scmp.eq.s32.totalorder %s108, 0
      %s111 = sadd.s32 %s110, 1
      %s112 = scalar_select %p109, %s110, %s111
      %p115 = pneg %p109
      %p116 = scmp.eq.s32.totalorder %s19, 1
      %p117 = por %p115, %p116
      %p118 = scmp.ne.s32.totalorder %s110, %s113
      %p119 = scmp.eq.s32.totalorder %s19, 0
      %p120 = por %p118, %p119
      %p121 = scmp.ne.s32.totalorder %s110, %s113
      %p122 = scmp.eq.s32.totalorder %s24, 1
      %p123 = por %p121, %p122
      %p124 = scmp.ne.s32.totalorder %s113, %s114
      %p125 = scmp.eq.s32.totalorder %s24, 0
      %p126 = por %p124, %p125
      %p127 = scmp.ne.s32.totalorder %s113, %s114
      %p128 = scmp.eq.s32.totalorder %s25, 1
      %p129 = por %p127, %p128
      %p131 = scmp.ne.s32.totalorder %s114, %s130
      %p132 = scmp.eq.s32.totalorder %s25, 0
      %p133 = por %p131, %p132
      %p134 = scmp.le.s32.totalorder 1, %s19
      %p135 = scmp.lt.s32.totalorder %s19, 3
      %p136 = pnand %p134, %p135
      %p137 = pneg %p136
      // Predicated region
      $region9: #{tpu_custom_call.1} parent=5 // pred_check
        _
      $region10: #{tpu_custom_call.1} parent=5 // pred_check_branch
        %139 = sbr.rel (%p136) target = $region12
      $region11: #{tpu_custom_call.1} parent=5 // pred_region
        %s140 = ssub.s32 %s19, 1
      $region12: #{tpu_custom_call.1} parent=5 // pred_fallthru
        _
      %p141 = scmp.lt.s32.totalorder %s19, 2
      // Predicated region
      $region13: #{tpu_custom_call.1} parent=5 // pred_check
        %p142 = pneg %p141
      $region14: #{tpu_custom_call.1} parent=5 // pred_check_branch
        %144 = sbr.rel (%p142) target = $region16
      $region15: #{tpu_custom_call.1} parent=5 // pred_region
        // Predicated region
        $region17: #{tpu_custom_call.1} parent=15 // pred_check
          %p145 = pneg %p62
        $region18: #{tpu_custom_call.1} parent=15 // pred_check_branch
          %147 = sbr.rel (%p145) target = $region20
        $region19: #{tpu_custom_call.1} parent=15 // pred_region
          %s148 = sand.u32 %s52, 1
          %s149 = scalar_lea.sflag [#allocation5], %s148
          %s150 = sand.u32 %s52, 1
          %s151 = smul.addr %s150, 8
          %s152 = scalar_lea.vmem [#allocation4], %s151
          %s153 = smul.u32 2, %s28
          %s155 = ssub.s32 128, 128
          %156 = vsyncadd %s149, %s155
          %s157 = smul.addr %s27, 2
          %s158 = sadd.s32 %s153, %s157
          %s159 = smul.addr %s26, 8
          %s160 = sadd.s32 %s158, %s159
          %s161 = smul.addr %s160, 16
          %s162 = scalar_lea.hbm %s1, %s161
          %s163 = sshll.u32 %s152, 4
          %s164 = int_to_ptr.vmem [resolvable:$true] %s163
          %169 = dma.hbm_to_vmem [thread:$0]  %s162, 128, %s164, %s149, 32, 32, 2
        $region20: #{tpu_custom_call.1} parent=15 // pred_fallthru
          _
        // Predicated region
        $region21: #{tpu_custom_call.1} parent=15 // pred_check
          %p170 = pneg %p92
        $region22: #{tpu_custom_call.1} parent=15 // pred_check_branch
          %172 = sbr.rel (%p170) target = $region24
        $region23: #{tpu_custom_call.1} parent=15 // pred_region
          %s173 = smul.u32 2, %s28
          %p174 = scmp.lt.s32.totalorder %s26, 1
          %s175 = scalar_select %p174, %s26, 1
          %p176 = scmp.lt.s32.totalorder %s27, 0
          %s177 = scalar_select %p176, %s27, 0
          %p178 = scmp.lt.s32.totalorder %s173, 1
          %s179 = scalar_select %p178, %s173, 1
          %s180 = smul.addr %s177, 2
          %s181 = sadd.s32 %s179, %s180
          %s182 = smul.addr %s175, 2
          %s183 = sadd.s32 %s181, %s182
          %s184 = scalar_lea.vmem %s2, %s183
          %s185 = smul.u32 2, %s28
        $region24: #{tpu_custom_call.1} parent=15 // pred_fallthru
          _
      $region16: #{tpu_custom_call.1} parent=5 // pred_fallthru
        _
      %p186 = scmp.le.s32.totalorder 1, %s19
      %p187 = scmp.lt.s32.totalorder %s19, 3
      %p188 = pnand %p186, %p187
      %p189 = pneg %p188
      // Predicated region
      $region25: #{tpu_custom_call.1} parent=5 // pred_check
        _
      $region26: #{tpu_custom_call.1} parent=5 // pred_check_branch
        %191 = sbr.rel (%p188) target = $region28
      $region27: #{tpu_custom_call.1} parent=5 // pred_region
        %s192 = ssub.s32 %s19, 1
        %s193 = sand.u32 %s55, 1
        %s194 = scalar_lea.sflag [#allocation5], %s193
        %s195 = sand.u32 %s55, 1
        %s196 = smul.addr %s195, 8
        %s197 = scalar_lea.vmem [#allocation4], %s196
        // Predicated region
        $region29: #{tpu_custom_call.1} parent=27 // pred_check
          %p198 = pneg %p68
        $region30: #{tpu_custom_call.1} parent=27 // pred_check_branch
          %200 = sbr.rel (%p198) target = $region32
        $region31: #{tpu_custom_call.1} parent=27 // pred_region
          %201 = dma.done %s194, 128
        $region32: #{tpu_custom_call.1} parent=27 // pred_fallthru
          _
        %s202 = sand.u32 %s55, 1
        %s203 = scalar_lea.sflag [#allocation5], %s202
        %s204 = sand.u32 %s55, 1
        %s205 = smul.addr %s204, 8
        %s206 = scalar_lea.vmem [#allocation4], %s205
        %p207 = pneg %p68
        %p208 = pneg %p65
        %s209 = smul.u32 2, %s31
        %p210 = scmp.lt.s32.totalorder %s29, 1
        %s211 = scalar_select %p210, %s29, 1
        %p212 = scmp.lt.s32.totalorder %s30, 0
        %s213 = scalar_select %p212, %s30, 0
        %p214 = scmp.lt.s32.totalorder %s209, 1
        %s215 = scalar_select %p214, %s209, 1
        %s216 = smul.addr %s213, 2
        %s217 = sadd.s32 %s215, %s216
        %s218 = smul.addr %s211, 2
        %s219 = sadd.s32 %s217, %s218
        %s220 = scalar_lea.vmem %s2, %s219
        %p221 = pneg %p98
        %p222 = pneg %p95
        %p223 = pneg %p126
        %p224 = pneg %p123
        %s225 = sand.u32 %s113, 1
        %s226 = scalar_lea.sflag [#allocation6], %s225
        %s227 = sand.u32 %s113, 1
        %s228 = smul.addr %s227, 4
        %s229 = scalar_lea.vmem [#allocation7], %s228
        %s230 = smul.u32 2, %s31
        %s231 = smul.u32 2, %s31
        %p232 = scmp.lt.s32.totalorder %s29, 1
        %s233 = scalar_select %p232, %s29, 1
        %p234 = scmp.lt.s32.totalorder %s30, 0
        %s235 = scalar_select %p234, %s30, 0
        %p236 = scmp.lt.s32.totalorder %s231, 1
        %s237 = scalar_select %p236, %s231, 1
        %s238 = smul.addr %s235, 2
        %s239 = sadd.s32 %s237, %s238
        %s240 = smul.addr %s233, 2
        %s241 = sadd.s32 %s239, %s240
        %s242 = scalar_lea.vmem %s2, %s241
        %s243 = smul.u32 2, %s31
        %p244 = scmp.eq.s32.totalorder %s31, 0
        // Predicated region
        $region33: #{tpu_custom_call.1} parent=27 // pred_check
          %p245 = pneg %p244
        $region34: #{tpu_custom_call.1} parent=27 // pred_check_branch
          %247 = sbr.rel (%p245) target = $region36
        $region35: #{tpu_custom_call.1} parent=27 // pred_region
          %v248 = vlaneseq
          %vm249 = vcmp.ge.s32.totalorder %v248, 0
          %vm250 = vcmp.lt.s32.totalorder %v248, 256
          %vm251 = vmand %vm249, %vm250
          %252 = vst.msk [vmem:[%s229] sm:$0x3] %vm251, 0.0
          %253 = vst.msk [vmem:[%s229 + $0x2] sm:$0x3] %vm251, 0.0
        $region36: #{tpu_custom_call.1} parent=27 // pred_fallthru
          _
        %s254 = smul.u32 0, 2
        %s255 = scalar_lea.vmem %s242, %s254
        %v256 = vld [vmem:[%s255] sm:$0x3]
        %s257 = scalar_lea.vmem %s197, %s254 [#allocation4]
        %v258 = vld [vmem:[%s257] sm:$0x3]
        %s259 = sadd.s32 %s254, 2
        %s260 = scalar_lea.vmem %s197, %s259 [#allocation4]
        %v261 = vld [vmem:[%s260] sm:$0x3]
        %v262 = vmax.f32 %v258, %v261
        %s263 = sadd.s32 %s254, 4
        %s264 = scalar_lea.vmem %s197, %s263 [#allocation4]
        %v265 = vld [vmem:[%s264] sm:$0x3]
        %v266 = vmax.f32 %v262, %v265
        %s267 = sadd.s32 %s254, 6
        %s268 = scalar_lea.vmem %s197, %s267 [#allocation4]
        %v269 = vld [vmem:[%s268] sm:$0x3]
        %v270 = vmax.f32 %v266, %v269
        %v271 = vsub.f32 %v258, %v270
        %v272 = vmul.f32 %v271, 1.442695
        %v273 = vpow.pop %v272
        %v274 = vadd.f32 %v273, 0.0
        %vm275 = vcmp.eq.s32.totalorder %v256, 0
        %v276 = vsel %vm275, %v258, 0.0
        %v277 = vsub.f32 %v261, %v270
        %v278 = vmul.f32 %v277, 1.442695
        %v279 = vpow.pop %v278
        %v280 = vadd.f32 %v274, %v279
        %vm281 = vcmp.eq.s32.totalorder %v256, 1
        %v282 = vsel %vm281, %v261, %v276
        %v283 = vsub.f32 %v265, %v270
        %v284 = vmul.f32 %v283, 1.442695
        %v285 = vpow.pop %v284
        %v286 = vadd.f32 %v280, %v285
        %vm287 = vcmp.eq.s32.totalorder %v256, 2
        %v288 = vsel %vm287, %v265, %v282
        %v289 = vsub.f32 %v269, %v270
        %v290 = vmul.f32 %v289, 1.442695
        %v291 = vpow.pop %v290
        %v292 = vadd.f32 %v286, %v291
        %vm293 = vcmp.eq.s32.totalorder %v256, 3
        %v294 = vsel %vm293, %v269, %v288
        %vm295 = vcmp.ge.s32.totalorder %v256, 0
        %vm296 = vcmp.lt.s32.totalorder %v256, 4
        %vm297 = vmand %vm295, %vm296
        %v298 = vsel %vm297, 1, 0
        %v299 = vcvt.s32.f32 %v298
        %v300 = vlog2.pop %v292
        %v301 = vmul.f32 %v300, 0.6931472
        %v302 = vadd.f32 %v301, %v270
        %v303 = vsub.f32 %v302, %v294
        %v304 = vmul.f32 %v299, %v303
        %s305 = scalar_lea.vmem %s229, %s254 [#allocation7]
        %v306 = vld [vmem:[%s305] sm:$0x3]
        %v307 = vadd.f32 %v306, %v304
        %v308 = vlaneseq
        %vm309 = vcmp.ge.s32.totalorder %v308, 0
        %vm310 = vcmp.lt.s32.totalorder %v308, 256
        %vm311 = vmand %vm309, %vm310
        %312 = vst.msk [vmem:[%s305] sm:$0x3] %vm311, %v307
        %s313 = scalar_lea.vmem %s229, %s259 [#allocation7]
        %v314 = vld [vmem:[%s313] sm:$0x3]
        %v315 = vadd.f32 %v314, %v299
        %316 = vst.msk [vmem:[%s313] sm:$0x3] %vm311, %v315
        %s317 = sand.u32 %s113, 1
        %s318 = scalar_lea.sflag [#allocation6], %s317
        %s319 = sand.u32 %s113, 1
        %s320 = smul.addr %s319, 4
        %s321 = scalar_lea.vmem [#allocation7], %s320
        // Predicated region
        $region37: #{tpu_custom_call.1} parent=27 // pred_check
          %p322 = pneg %p123
        $region38: #{tpu_custom_call.1} parent=27 // pred_check_branch
          %324 = sbr.rel (%p322) target = $region40
        $region39: #{tpu_custom_call.1} parent=27 // pred_region
          %s326 = ssub.s32 64, 64
          %327 = vsyncadd %s318, %s326
          %s328 = smul.addr %s30, 4
          %s329 = smul.addr %s29, 4
          %s330 = sadd.s32 %s328, %s329
          %s331 = smul.addr %s330, 16
          %s332 = scalar_lea.hbm %s3, %s331
          %s333 = sshll.u32 %s321, 4
          %s334 = int_to_ptr.vmem [resolvable:$true] %s333
          %339 = dma.vmem_to_hbm [thread:$0]  %s334, 64, %s332, %s318, 32, 32, 2
        $region40: #{tpu_custom_call.1} parent=27 // pred_fallthru
          _
      $region28: #{tpu_custom_call.1} parent=5 // pred_fallthru
        _
      %p340 = scmp.le.s32.totalorder 2, %s19
      // Predicated region
      $region41: #{tpu_custom_call.1} parent=5 // pred_check
        %p341 = pneg %p340
      $region42: #{tpu_custom_call.1} parent=5 // pred_check_branch
        %343 = sbr.rel (%p341) target = $region44
      $region43: #{tpu_custom_call.1} parent=5 // pred_region
        %s344 = ssub.s32 %s19, 2
        // Predicated region
        $region45: #{tpu_custom_call.1} parent=43 // pred_check
          %p345 = pneg %p129
        $region46: #{tpu_custom_call.1} parent=43 // pred_check_branch
          %347 = sbr.rel (%p345) target = $region48
        $region47: #{tpu_custom_call.1} parent=43 // pred_region
          %s348 = sand.u32 %s114, 1
          %s349 = scalar_lea.sflag [#allocation6], %s348
          %s350 = sand.u32 %s114, 1
          %s351 = smul.addr %s350, 4
          %s352 = scalar_lea.vmem [#allocation7], %s351
          %353 = dma.done %s349, 64
        $region48: #{tpu_custom_call.1} parent=43 // pred_fallthru
          _
      $region44: #{tpu_custom_call.1} parent=5 // pred_fallthru
        _
    $region6: #{tpu_custom_call.1} parent=1 // loop_footer
      %s23 = sadd.s32 1, %s19
    $region7: #{tpu_custom_call.1} parent=1 // loop_footer_branch
      %18 = sbr.rel target = $region3
    $region8: #{tpu_custom_call.1} parent=1 // loop_exit
      _
    %354 = vsyncpa [#allocation5], 1
    %s355 = scalar_lea.sflag [#allocation5], 1
    %356 = vsyncpa %s355, 1
    %357 = vsyncpa [#allocation6], 1
    %s358 = scalar_lea.sflag [#allocation6], 1
    %359 = vsyncpa %s358, 1

</llo_original>
